<compile_context>
chip_gen: v7x
topology: tpu7x:2x2x1
jax: 0.10.0
libtpu: 0.0.40
codegen_flags: <defaults>
</compile_context>

<pallas_src>
import functools

import jax
import jax.numpy as jnp
from jax.experimental import pallas as pl
from jax.experimental.pallas import tpu as pltpu

_LANE = 128     # lane width (last dim of a vreg)
_SUBLANE = 8    # sublane count (second-to-last dim of a vreg, f32)


def _round_up(n, m):
    return ((n + m - 1) // m) * m


def _cdiv(a, b):
    return (a + b - 1) // b


def _choose_tb(batch, block_b):
    """Batch tile size.

    - single block == full batch when the batch is too small to split on a
      16-row boundary (block dim == full array dim is always legal),
    - otherwise a multiple of 16 (bf16 sublane packing), capped at block_b,
      and sized so there are >= 2 tiles (keeps both v7x TensorCores busy).
    """
    tb = min(block_b, _round_up(_cdiv(batch, 2), 16))
    tb = _round_up(tb, 16)
    if tb >= batch:
        return batch
    return tb


def _dqn_kernel(x_ref, w1_ref, b1_ref, w2_ref, b2_ref, o_ref):
    # Cast x to the MXU compute dtype in-register (no wrapper pad/cast pass).
    x = x_ref[...].astype(w1_ref.dtype)
    # Layer 1: bf16 MXU matmul with f32 accumulation.
    h = jnp.dot(x, w1_ref[...], preferred_element_type=jnp.float32)
    # Bias + ReLU in f32 on the VPU (safe on v5e, free on v6e/v7x).
    h = jnp.maximum(h + b1_ref[...], 0.0)
    # Layer 2: cast activations back to the MXU compute dtype for the 2nd dot.
    out = jnp.dot(h.astype(w2_ref.dtype), w2_ref[...],
                  preferred_element_type=jnp.float32)
    # Lane-dense (TB, 128) store; bf16 output halves HBM writeback.
    o_ref[...] = (out + b2_ref[...]).astype(o_ref.dtype)


def prepare_params(w1, b1, w2, b2, *, compute_dtype=jnp.bfloat16):
    """One-time weight preparation: pad feature dims to lane width (128) and
    cast MXU operands to bf16.  Do this once, not per forward call."""
    in_features, hidden = w1.shape
    hidden2, out_features = w2.shape
    assert hidden2 == hidden, "w2 must be (hidden, out) — transposed vs PyTorch"
    hp = _round_up(hidden, _LANE)
    op = _round_up(out_features, _LANE)
    w1p = jnp.zeros((in_features, hp), compute_dtype).at[:, :hidden].set(
        w1.astype(compute_dtype))
    b1p = jnp.zeros((1, hp), jnp.float32).at[:, :hidden].set(
        b1.reshape(1, hidden).astype(jnp.float32))
    w2p = jnp.zeros((hp, op), compute_dtype).at[:hidden, :out_features].set(
        w2.astype(compute_dtype))
    b2p = jnp.zeros((1, op), jnp.float32).at[:, :out_features].set(
        b2.reshape(1, out_features).astype(jnp.float32))
    return w1p, b1p, w2p, b2p


@functools.partial(jax.jit,
                   static_argnames=("out_features", "block_b", "out_dtype"))
def dqn_forward(x, w1p, b1p, w2p, b2p, *, out_features, block_b=1024,
                out_dtype=jnp.bfloat16):
    """relu(x @ w1 + b1) @ w2 + b2, fused into one Pallas TPU kernel.

    x: (B, in) f32 (cast to bf16 inside the kernel).  w1p/b1p/w2p/b2p are the
    pre-padded, pre-cast tensors from prepare_params().  Weights stay resident
    in VMEM across batch tiles; x/out stream and double-buffer.
    """
    B, in_features = x.shape
    assert w1p.shape[0] == in_features
    hp = w1p.shape[1]
    op = w2p.shape[1]

    TB = _choose_tb(B, block_b)
    grid = (_cdiv(B, TB),)

    # Only needed if a very large block_b would exceed v5e's 16 MiB default
    # scoped VMEM (double-buffered x + out tiles plus resident weights).
    stream_bytes = 2 * (TB * in_features * x.dtype.itemsize
                        + TB * op * jnp.dtype(out_dtype).itemsize)
    resident_bytes = (w1p.size * w1p.dtype.itemsize
                      + w2p.size * w2p.dtype.itemsize
                      + (b1p.size + b2p.size) * 4)
    vmem_limit = None
    if stream_bytes + resident_bytes > 12 * 1024 * 1024:
        vmem_limit = min(2 * (stream_bytes + resident_bytes), 100 * 1024 * 1024)

    out_padded = pl.pallas_call(
        _dqn_kernel,
        out_shape=jax.ShapeDtypeStruct((B, op), out_dtype),
        grid=grid,
        in_specs=[
            pl.BlockSpec((TB, in_features), lambda i: (i, 0)),  # x: streamed
            pl.BlockSpec((in_features, hp), lambda i: (0, 0)),  # w1: resident
            pl.BlockSpec((1, hp), lambda i: (0, 0)),            # b1: resident
            pl.BlockSpec((hp, op), lambda i: (0, 0)),           # w2: resident
            pl.BlockSpec((1, op), lambda i: (0, 0)),            # b2: resident
        ],
        out_specs=pl.BlockSpec((TB, op), lambda i: (i, 0)),
        compiler_params=pltpu.CompilerParams(
            dimension_semantics=("parallel",),   # independent tiles → megacore
            vmem_limit_bytes=vmem_limit),
    )(x, w1p, b1p, w2p, b2p)

    # Tiny epilogue: pick the real action columns, return f32 like nn.Linear.
    return out_padded[:, :out_features].astype(jnp.float32)


def init_dqn_params(key, input_size, hidden_size, output_size):
    """Deterministic init mimicking nn.Linear: U(-1/sqrt(fan_in), 1/sqrt(fan_in)).

    Weights are stored as (in, out) so the kernel computes x @ w directly."""
    k1, k2, k3, k4 = jax.random.split(key, 4)
    bound1 = 1.0 / jnp.sqrt(jnp.float32(input_size))
    bound2 = 1.0 / jnp.sqrt(jnp.float32(hidden_size))
    w1 = jax.random.uniform(k1, (input_size, hidden_size), jnp.float32,
                            -bound1, bound1)
    b1 = jax.random.uniform(k2, (hidden_size,), jnp.float32, -bound1, bound1)
    w2 = jax.random.uniform(k3, (hidden_size, output_size), jnp.float32,
                            -bound2, bound2)
    b2 = jax.random.uniform(k4, (output_size,), jnp.float32, -bound2, bound2)
    return w1, b1, w2, b2


def dqn_reference(x, w1, b1, w2, b2, compute_dtype=jnp.bfloat16,
                  out_dtype=jnp.bfloat16):
    """Pure-JAX reference matching the kernel's bf16-matmul / f32-accumulate /
    bf16-output semantics."""
    xc = x.astype(compute_dtype)
    h = jnp.dot(xc, w1.astype(compute_dtype),
                preferred_element_type=jnp.float32) + b1.reshape(1, -1)
    h = jnp.maximum(h, 0.0)
    out = jnp.dot(h.astype(compute_dtype), w2.astype(compute_dtype),
                  preferred_element_type=jnp.float32) + b2.reshape(1, -1)
    return out.astype(out_dtype).astype(jnp.float32)


if __name__ == "__main__":
    # Small shapes consistent with the module: state vector in, Q-values out.
    batch, input_size, hidden_size, output_size = 8, 16, 32, 4

    key = jax.random.PRNGKey(0)
    kx, kp = jax.random.split(key)
    x = jax.random.normal(kx, (batch, input_size), jnp.float32)
    w1, b1, w2, b2 = init_dqn_params(kp, input_size, hidden_size, output_size)

    # One-time parameter preparation (hoisted out of the forward path).
    params = prepare_params(w1, b1, w2, b2)

    out = dqn_forward(x, *params, out_features=output_size)
    out = jax.block_until_ready(out)

    ref = dqn_reference(x, w1, b1, w2, b2)
    assert out.shape == (batch, output_size)
    assert out.dtype == jnp.float32
    assert jnp.allclose(out, ref, atol=5e-3, rtol=5e-3), "mismatch vs reference"

    # TODO(synk): training-side pieces of the original file (optimizer, replay
    # buffer, .save()/torch.save) are out of scope for a forward-pass kernel.
    print("KERNEL_OK")
</pallas_src>

<mosaic_0001>
module attributes {stable_mosaic.version = 11 : i64} {
  func.func @_dqn_kernel(%arg0: i32, %arg1: memref<8x16xf32, #tpu.memory_space<vmem>>, %arg2: memref<16x128xbf16, #tpu.memory_space<vmem>>, %arg3: memref<1x128xf32, #tpu.memory_space<vmem>>, %arg4: memref<128x128xbf16, #tpu.memory_space<vmem>>, %arg5: memref<1x128xf32, #tpu.memory_space<vmem>>, %arg6: memref<8x128xbf16, #tpu.memory_space<vmem>>) attributes {dimension_semantics = [#tpu.dimension_semantics<parallel>], iteration_bounds = array<i64: 1>, scalar_prefetch = 0 : i64, scratch_operands = 0 : i64, tpu.core_type = #tpu.core_type<tc>, window_params = [{transform_indices = @transform_0, window_bounds = array<i64: 8, 16>}, {pipeline_mode = #tpu.pipeline_mode<synchronous>, transform_indices = @transform_1, window_bounds = array<i64: 16, 128>}, {pipeline_mode = #tpu.pipeline_mode<synchronous>, transform_indices = @transform_2, window_bounds = array<i64: 1, 128>}, {pipeline_mode = #tpu.pipeline_mode<synchronous>, transform_indices = @transform_3, window_bounds = array<i64: 128, 128>}, {pipeline_mode = #tpu.pipeline_mode<synchronous>, transform_indices = @transform_4, window_bounds = array<i64: 1, 128>}, {transform_indices = @transform_5, window_bounds = array<i64: 8, 128>}]} {
    %c0 = arith.constant 0 : index
    %c0_0 = arith.constant 0 : index
    %0 = vector.load %arg1[%c0, %c0_0] : memref<8x16xf32, #tpu.memory_space<vmem>>, vector<8x16xf32>
    %1 = arith.truncf %0 : vector<8x16xf32> to vector<8x16xbf16>
    %c0_1 = arith.constant 0 : index
    %c0_2 = arith.constant 0 : index
    %2 = vector.load %arg2[%c0_1, %c0_2] : memref<16x128xbf16, #tpu.memory_space<vmem>>, vector<16x128xbf16>
    %cst = arith.constant dense<0.000000e+00> : vector<8x128xf32>
    %3 = tpu.matmul %1, %2, %cst {dimension_numbers = #tpu.dot_dimension_numbers<[1], [0], [0], [1], [0, 0, 1, 1], [], []>} : vector<8x16xbf16>, vector<16x128xbf16>, vector<8x128xf32> -> vector<8x128xf32>
    %c0_3 = arith.constant 0 : index
    %c0_4 = arith.constant 0 : index
    %4 = vector.load %arg3[%c0_3, %c0_4] : memref<1x128xf32, #tpu.memory_space<vmem>>, vector<1x128xf32>
    %5 = vector.broadcast %4 : vector<1x128xf32> to vector<8x128xf32>
    %6 = arith.addf %3, %5 : vector<8x128xf32>
    %cst_5 = arith.constant 0.000000e+00 : f32
    %7 = vector.broadcast %cst_5 : f32 to vector<8x128xf32>
    %8 = arith.maximumf %6, %7 : vector<8x128xf32>
    %9 = arith.truncf %8 : vector<8x128xf32> to vector<8x128xbf16>
    %c0_6 = arith.constant 0 : index
    %c0_7 = arith.constant 0 : index
    %10 = vector.load %arg4[%c0_6, %c0_7] : memref<128x128xbf16, #tpu.memory_space<vmem>>, vector<128x128xbf16>
    %cst_8 = arith.constant dense<0.000000e+00> : vector<8x128xf32>
    %11 = tpu.matmul %9, %10, %cst_8 {dimension_numbers = #tpu.dot_dimension_numbers<[1], [0], [0], [1], [0, 0, 1, 1], [], []>} : vector<8x128xbf16>, vector<128x128xbf16>, vector<8x128xf32> -> vector<8x128xf32>
    %c0_9 = arith.constant 0 : index
    %c0_10 = arith.constant 0 : index
    %12 = vector.load %arg5[%c0_9, %c0_10] : memref<1x128xf32, #tpu.memory_space<vmem>>, vector<1x128xf32>
    %13 = vector.broadcast %12 : vector<1x128xf32> to vector<8x128xf32>
    %14 = arith.addf %11, %13 : vector<8x128xf32>
    %15 = arith.truncf %14 : vector<8x128xf32> to vector<8x128xbf16>
    %c0_11 = arith.constant 0 : index
    %c0_12 = arith.constant 0 : index
    %16 = vector.load %arg6[%c0_11, %c0_12] : memref<8x128xbf16, #tpu.memory_space<vmem>>, vector<8x128xbf16>
    tpu.vector_store %arg6[%c0_11, %c0_12], %15 {strides = array<i32>} : memref<8x128xbf16, #tpu.memory_space<vmem>>, vector<8x128xbf16>,
    return
  }
  func.func @transform_0(%arg0: i32) -> (i32, i32) {
    %c0_i32 = arith.constant 0 : i32
    %c0_i32_0 = arith.constant 0 : i32
    return %arg0, %c0_i32 : i32, i32
  }
  func.func @transform_1(%arg0: i32) -> (i32, i32) {
    %c0_i32 = arith.constant 0 : i32
    %c0_i32_0 = arith.constant 0 : i32
    %c0_i32_1 = arith.constant 0 : i32
    return %c0_i32, %c0_i32_0 : i32, i32
  }
  func.func @transform_2(%arg0: i32) -> (i32, i32) {
    %c0_i32 = arith.constant 0 : i32
    %c0_i32_0 = arith.constant 0 : i32
    %c0_i32_1 = arith.constant 0 : i32
    return %c0_i32, %c0_i32_0 : i32, i32
  }
  func.func @transform_3(%arg0: i32) -> (i32, i32) {
    %c0_i32 = arith.constant 0 : i32
    %c0_i32_0 = arith.constant 0 : i32
    %c0_i32_1 = arith.constant 0 : i32
    return %c0_i32, %c0_i32_0 : i32, i32
  }
  func.func @transform_4(%arg0: i32) -> (i32, i32) {
    %c0_i32 = arith.constant 0 : i32
    %c0_i32_0 = arith.constant 0 : i32
    %c0_i32_1 = arith.constant 0 : i32
    return %c0_i32, %c0_i32_0 : i32, i32
  }
  func.func @transform_5(%arg0: i32) -> (i32, i32) {
    %c0_i32 = arith.constant 0 : i32
    %c0_i32_0 = arith.constant 0 : i32
    return %arg0, %c0_i32 : i32, i32
  }
}

</mosaic_0001>

<llo_original>
// kernel: dqn_forward.1
$region0: #{dqn_forward.1}
  #allocation0 [shape = 'u32[]', space=smem, size = 0x4, offset = 0x4, fixed_abs, tag = 'smem constant byte address 0x4 - core index']
  #allocation1 [shape = 'u32[144,128]{1,0:T(1,128)}', space=vmem, size = 0x12000, scoped, tag = 'internal scratch']
  %s0 = inlined_call_operand.hbm [shape: f32[8,16], index: 0, kind: input, shape index: {}]
  %s1 = inlined_call_operand.hbm [shape: bf16[16,128], index: 1, kind: input, shape index: {}]
  %s2 = inlined_call_operand.vmem [shape: f32[1,128], index: 2, kind: input, shape index: {}]
  %s3 = inlined_call_operand.hbm [shape: bf16[128,128], index: 3, kind: input, shape index: {}]
  %s4 = inlined_call_operand.vmem [shape: f32[1,128], index: 4, kind: input, shape index: {}]
  %s5 = inlined_call_operand.vmem [shape: bf16[8,128], index: 5, kind: output, shape index: {}]
  %s6 = sld [smem:[#allocation0]]
  $region42: #{dqn_forward.1} parent=0
    _
  %s8 = ssub.s32 1, %s6
  %s9 = scalar_select 0, %s8, %s6
  $region1: #{dqn_forward.1} parent=0
    #allocation2 [shape = 'u8[4096]{0}', space=vmem, size = 0x1000, scoped, tag = 'input window, operand 0, single buffered']
    #allocation3 [shape = 's32[1]{0}', space=sflag, size = 0x4, scoped, tag = 'scoped memory for dqn_forward.1']
    #allocation4 [shape = 'u8[4096]{0}', space=vmem, size = 0x1000, scoped, tag = 'input window, operand 1, single buffered']
    #allocation5 [shape = 's32[1]{0}', space=sflag, size = 0x4, scoped, tag = 'scoped memory for dqn_forward.1']
    #allocation6 [shape = 'u8[32768]{0}', space=vmem, size = 0x8000, scoped, tag = 'input window, operand 3, single buffered']
    %10 = vsyncpa [#allocation3], 0
    %11 = vsyncpa [#allocation5], 0
    // Predicated region
    $region2: #{dqn_forward.1} parent=1 // pred_check
      _
    $region3: #{dqn_forward.1} parent=1 // pred_check_branch
      %13 = sbr.rel (0) target = $region5
    $region4: #{dqn_forward.1} parent=1 // pred_region
      %s15 = ssub.s32 128, 128
      %16 = vsyncadd [#allocation3], %s15
      %s18 = sshll.u32 [#allocation2], 4
      %s19 = int_to_ptr.vmem [resolvable:$true] %s18
      %21 = dma.hbm_to_vmem [thread:$0]  %s0, 128, %s19, [#allocation3]
    $region5: #{dqn_forward.1} parent=1 // pred_fallthru
      _
    // Predicated region
    $region6: #{dqn_forward.1} parent=1 // pred_check
      _
    $region7: #{dqn_forward.1} parent=1 // pred_check_branch
      %23 = sbr.rel (0) target = $region9
    $region8: #{dqn_forward.1} parent=1 // pred_region
      %s25 = ssub.s32 128, 128
      %26 = vsyncadd [#allocation5], %s25
      %s27 = sshll.u32 [#allocation4], 4
      %s28 = int_to_ptr.vmem [resolvable:$true] %s27
      %33 = dma.hbm_to_vmem [thread:$0]  %s1, 128, %s28, [#allocation5], 64, 64, 4
    $region9: #{dqn_forward.1} parent=1 // pred_fallthru
      _
    // Predicated region
    $region10: #{dqn_forward.1} parent=1 // pred_check
      _
    $region11: #{dqn_forward.1} parent=1 // pred_check_branch
      %35 = sbr.rel (0) target = $region13
    $region12: #{dqn_forward.1} parent=1 // pred_region
      _
    $region13: #{dqn_forward.1} parent=1 // pred_fallthru
      _
    // Predicated region
    $region14: #{dqn_forward.1} parent=1 // pred_check
      _
    $region15: #{dqn_forward.1} parent=1 // pred_check_branch
      %37 = sbr.rel (0) target = $region17
    $region16: #{dqn_forward.1} parent=1 // pred_region
      %s39 = ssub.s32 1024, 1024
      %40 = vsyncadd [#allocation5], %s39
      %s41 = sshll.u32 [#allocation6], 4
      %s42 = int_to_ptr.vmem [resolvable:$true] %s41
      %47 = dma.hbm_to_vmem [thread:$0]  %s3, 1024, %s42, [#allocation5], 64, 64, 4
    $region17: #{dqn_forward.1} parent=1 // pred_fallthru
      _
    // Predicated region
    $region18: #{dqn_forward.1} parent=1 // pred_check
      _
    $region19: #{dqn_forward.1} parent=1 // pred_check_branch
      %49 = sbr.rel (0) target = $region21
    $region20: #{dqn_forward.1} parent=1 // pred_region
      _
    $region21: #{dqn_forward.1} parent=1 // pred_fallthru
      _
    // Predicated region
    $region22: #{dqn_forward.1} parent=1 // pred_check
      _
    $region23: #{dqn_forward.1} parent=1 // pred_check_branch
      %51 = sbr.rel (0) target = $region25
    $region24: #{dqn_forward.1} parent=1 // pred_region
      %52 = dma.done [#allocation3], 128
    $region25: #{dqn_forward.1} parent=1 // pred_fallthru
      _
    // Predicated region
    $region26: #{dqn_forward.1} parent=1 // pred_check
      _
    $region27: #{dqn_forward.1} parent=1 // pred_check_branch
      %54 = sbr.rel (0) target = $region29
    $region28: #{dqn_forward.1} parent=1 // pred_region
      %55 = dma.done [#allocation5], 128
    $region29: #{dqn_forward.1} parent=1 // pred_fallthru
      _
    // Predicated region
    $region30: #{dqn_forward.1} parent=1 // pred_check
      _
    $region31: #{dqn_forward.1} parent=1 // pred_check_branch
      %57 = sbr.rel (0) target = $region33
    $region32: #{dqn_forward.1} parent=1 // pred_region
      %58 = dma.done [#allocation5], 1024
    $region33: #{dqn_forward.1} parent=1 // pred_fallthru
      _
    %v60 = vld [vmem:[#allocation2] sm:$0xff]
    %v61 = vpack.c.bf16 %v60, %v60
    %v62 = vld [vmem:[#allocation4] sm:$0xf]
    %v63 = vld [vmem:[#allocation4 + $0x4] sm:$0xf]
    %v64 = vld [vmem:[%s2] sm:$0x1]
    %v66 = vlaneseq
    %v67 = vshrl.u32 %v66, 7
    %v68 = vsub.s32 0, %v67
    %v69 = vrot.slane %v64, %v68
    %v73 = vunpack.c.l.b16 %v62
    %v74 = vunpack.c.l.b16 %v63
    %v75 = vpack.c.b16 %v74, %v73
    %vm77 = vcmask 130048
    %v79 = vsel %vm77, %v61, 0
    %81 = vmatprep.subr.bf16.mxu0 0
    %82 = vmatpush1.bf16.msra.mxu0 %v75
    %83 = vmatprep.subr.bf16.mxu0 0
    %84 = vmatpush1.bf16.msra.mxu0 0
    %85 = vmatprep.subr.bf16.mxu0 0
    %86 = vmatpush1.bf16.msra.mxu0 0
    %87 = vmatprep.subr.bf16.mxu0 0
    %88 = vmatpush1.bf16.msra.mxu0 0
    %89 = vmatprep.subr.bf16.mxu0 0
    %90 = vmatpush1.bf16.msra.mxu0 0
    %91 = vmatprep.subr.bf16.mxu0 0
    %92 = vmatpush1.bf16.msra.mxu0 0
    %93 = vmatprep.subr.bf16.mxu0 0
    %94 = vmatpush1.bf16.msra.mxu0 0
    %95 = vmatprep.subr.bf16.mxu0 0
    %96 = vmatpush1.bf16.msra.mxu0 0
    %97 = vmatprep.subr.bf16.mxu0 0
    %98 = vmatpush1.bf16.msra.mxu0 0
    %99 = vmatprep.subr.bf16.mxu0 0
    %100 = vmatpush1.bf16.msra.mxu0 0
    %101 = vmatprep.subr.bf16.mxu0 0
    %102 = vmatpush1.bf16.msra.mxu0 0
    %103 = vmatprep.subr.bf16.mxu0 0
    %104 = vmatpush1.bf16.msra.mxu0 0
    %105 = vmatprep.subr.bf16.mxu0 0
    %106 = vmatpush1.bf16.msra.mxu0 0
    %107 = vmatprep.subr.bf16.mxu0 0
    %108 = vmatpush1.bf16.msra.mxu0 0
    %109 = vmatprep.subr.bf16.mxu0 0
    %110 = vmatpush1.bf16.msra.mxu0 0
    %111 = vmatprep.subr.bf16.mxu0 0
    %112 = vmatpush1.bf16.msra.mxu0 0
    %113 = vmatprep.mubr.bf16.mxu0 0
    %114 = vmatmul.mubr.bf16.gmra.mrb[0].mxu0 %v79
    %v115 = vpop.f32.mrb[0].mxu0
    %v116 = vadd.f32 %v69, %v115
    %v117 = vpop.f32.mrb[0].mxu0
    %v118 = vpop.f32.mrb[0].mxu0
    %v119 = vpop.f32.mrb[0].mxu0
    %120 = vdwg.mxu0
    %v121 = vmax.f32 %v116, 0.0
    %v122 = vpack.c.bf16 %v121, %v121
    %v123 = vld [vmem:[#allocation6] sm:$0xf]
    %v124 = vld [vmem:[#allocation6 + $0x4] sm:$0xf]
    %v125 = vld [vmem:[#allocation6 + $0x8] sm:$0xf]
    %v126 = vld [vmem:[#allocation6 + $0xc] sm:$0xf]
    %v127 = vld [vmem:[#allocation6 + $0x10] sm:$0xf]
    %v128 = vld [vmem:[#allocation6 + $0x14] sm:$0xf]
    %v129 = vld [vmem:[#allocation6 + $0x18] sm:$0xf]
    %v130 = vld [vmem:[#allocation6 + $0x1c] sm:$0xf]
    %v131 = vld [vmem:[#allocation6 + $0x20] sm:$0xf]
    %v132 = vld [vmem:[#allocation6 + $0x24] sm:$0xf]
    %v133 = vld [vmem:[#allocation6 + $0x28] sm:$0xf]
    %v134 = vld [vmem:[#allocation6 + $0x2c] sm:$0xf]
    %v135 = vld [vmem:[#allocation6 + $0x30] sm:$0xf]
    %v136 = vld [vmem:[#allocation6 + $0x34] sm:$0xf]
    %v137 = vld [vmem:[#allocation6 + $0x38] sm:$0xf]
    %v138 = vld [vmem:[#allocation6 + $0x3c] sm:$0xf]
    %v139 = vld [vmem:[%s4] sm:$0x1]
    %v141 = vlaneseq
    %v142 = vshrl.u32 %v141, 7
    %v143 = vsub.s32 0, %v142
    %v144 = vrot.slane %v139, %v143
    %v162 = vunpack.c.l.b16 %v123
    %v163 = vunpack.c.l.b16 %v124
    %v164 = vunpack.c.l.b16 %v125
    %v165 = vunpack.c.l.b16 %v126
    %v166 = vunpack.c.l.b16 %v127
    %v167 = vunpack.c.l.b16 %v128
    %v168 = vunpack.c.l.b16 %v129
    %v169 = vunpack.c.l.b16 %v130
    %v170 = vunpack.c.l.b16 %v131
    %v171 = vunpack.c.l.b16 %v132
    %v172 = vunpack.c.l.b16 %v133
    %v173 = vunpack.c.l.b16 %v134
    %v174 = vunpack.c.l.b16 %v135
    %v175 = vunpack.c.l.b16 %v136
    %v176 = vunpack.c.l.b16 %v137
    %v177 = vunpack.c.l.b16 %v138
    %v178 = vpack.c.b16 %v163, %v162
    %v179 = vpack.c.b16 %v165, %v164
    %v180 = vpack.c.b16 %v167, %v166
    %v181 = vpack.c.b16 %v169, %v168
    %v182 = vpack.c.b16 %v171, %v170
    %v183 = vpack.c.b16 %v173, %v172
    %v184 = vpack.c.b16 %v175, %v174
    %v185 = vpack.c.b16 %v177, %v176
    %194 = vmatprep.subr.bf16.mxu0 0
    %195 = vmatpush1.bf16.msra.mxu0 %v178
    %196 = vmatprep.subr.bf16.mxu0 0
    %197 = vmatpush1.bf16.msra.mxu0 %v179
    %198 = vmatprep.subr.bf16.mxu0 0
    %199 = vmatpush1.bf16.msra.mxu0 %v180
    %200 = vmatprep.subr.bf16.mxu0 0
    %201 = vmatpush1.bf16.msra.mxu0 %v181
    %202 = vmatprep.subr.bf16.mxu0 0
    %203 = vmatpush1.bf16.msra.mxu0 %v182
    %204 = vmatprep.subr.bf16.mxu0 0
    %205 = vmatpush1.bf16.msra.mxu0 %v183
    %206 = vmatprep.subr.bf16.mxu0 0
    %207 = vmatpush1.bf16.msra.mxu0 %v184
    %208 = vmatprep.subr.bf16.mxu0 0
    %209 = vmatpush1.bf16.msra.mxu0 %v185
    %210 = vmatprep.subr.bf16.mxu0 0
    %211 = vmatpush1.bf16.msra.mxu0 0
    %212 = vmatprep.subr.bf16.mxu0 0
    %213 = vmatpush1.bf16.msra.mxu0 0
    %214 = vmatprep.subr.bf16.mxu0 0
    %215 = vmatpush1.bf16.msra.mxu0 0
    %216 = vmatprep.subr.bf16.mxu0 0
    %217 = vmatpush1.bf16.msra.mxu0 0
    %218 = vmatprep.subr.bf16.mxu0 0
    %219 = vmatpush1.bf16.msra.mxu0 0
    %220 = vmatprep.subr.bf16.mxu0 0
    %221 = vmatpush1.bf16.msra.mxu0 0
    %222 = vmatprep.subr.bf16.mxu0 0
    %223 = vmatpush1.bf16.msra.mxu0 0
    %224 = vmatprep.subr.bf16.mxu0 0
    %225 = vmatpush1.bf16.msra.mxu0 0
    %226 = vmatprep.mubr.bf16.mxu0 0
    %227 = vmatmul.mubr.bf16.gmra.mrb[0].mxu0 %v122
    %v228 = vpop.f32.mrb[0].mxu0
    %v229 = vadd.f32 %v144, %v228
    %v230 = vpop.f32.mrb[0].mxu0
    %v231 = vpop.f32.mrb[0].mxu0
    %v232 = vpop.f32.mrb[0].mxu0
    %233 = vdwg.mxu0
    %v234 = vpack.c.bf16 %v229, %v229
    %235 = vst [vmem:[%s5] sm:$0xf] %v234
    // Predicated region
    $region34: #{dqn_forward.1} parent=1 // pred_check
      _
    $region35: #{dqn_forward.1} parent=1 // pred_check_branch
      %237 = sbr.rel (0) target = $region37
    $region36: #{dqn_forward.1} parent=1 // pred_region
      _
    $region37: #{dqn_forward.1} parent=1 // pred_fallthru
      _
    // Predicated region
    $region38: #{dqn_forward.1} parent=1 // pred_check
      _
    $region39: #{dqn_forward.1} parent=1 // pred_check_branch
      %239 = sbr.rel (0) target = $region41
    $region40: #{dqn_forward.1} parent=1 // pred_region
      _
    $region41: #{dqn_forward.1} parent=1 // pred_fallthru
      _
    %240 = vsyncpa [#allocation3], 1
    %241 = vsyncpa [#allocation5], 1

</llo_original>
